<compile_context>
chip_gen: v7x
topology: tpu7x:2x2x1
jax: 0.10.0
libtpu: 0.0.40
codegen_flags: <defaults>
</compile_context>

<pallas_src>
import jax
import jax.numpy as jnp
from jax.experimental import pallas as pl
from jax.experimental.pallas import tpu as pltpu


def _logx_kernel(qmu_ref, qvar_ref, pmean_ref, pvar_ref, eps_ref, x_ref, kl_ref):
    mu = qmu_ref[...]
    log_var = qvar_ref[...]          # q_var == log(var) by construction
    var = jnp.exp(log_var)

    # Reparameterized sample: x = mu + sqrt(var) * eps
    x_ref[...] = mu + jnp.sqrt(var) * eps_ref[...]

    # KL( N(mu, var) || N(prior_mean, prior_var) ), summed to a scalar.
    pm = pmean_ref[...]
    pv = pvar_ref[...]
    kl_terms = 0.5 * (jnp.log(pv) - log_var + (var + (mu - pm) ** 2) / pv - 1.0)
    kl_ref[0, 0] = jnp.sum(kl_terms)


def forward(q_mu, q_var, prior_mean, prior_var, eps):
    """Pallas implementation of LogXInitial.forward (eps passed explicitly)."""
    S, X = q_mu.shape
    vmem = pl.BlockSpec(memory_space=pltpu.MemorySpace.VMEM)
    smem = pl.BlockSpec(memory_space=pltpu.MemorySpace.SMEM)

    x, kl = pl.pallas_call(
        _logx_kernel,
        out_shape=(
            jax.ShapeDtypeStruct((S, X), jnp.float32),   # x (lane-dense)
            jax.ShapeDtypeStruct((1, 1), jnp.float32),   # scalar KL
        ),
        in_specs=[vmem, vmem, vmem, vmem, vmem],
        out_specs=(vmem, smem),
    )(q_mu, q_var, prior_mean, prior_var, eps)
    return x, kl[0, 0]


def reference(q_mu, q_var, prior_mean, prior_var, eps):
    """Pure-JAX mirror of the PyTorch forward, for correctness checking."""
    var = jnp.exp(q_var)
    x = q_mu + jnp.sqrt(var) * eps
    kl = 0.5 * jnp.sum(
        jnp.log(prior_var) - q_var + (var + (q_mu - prior_mean) ** 2) / prior_var - 1.0
    )
    return x, kl


if __name__ == "__main__":
    # Small shapes consistent with the module: num_subj=8 subjects, num_taxa=128
    # taxa (128 keeps the output lane-dense per the perf review).
    S, X = 8, 128

    key = jax.random.PRNGKey(0)
    k_pm, k_pv, k_qv, k_eps = jax.random.split(key, 4)

    prior_mean = jax.random.normal(k_pm, (S, X), dtype=jnp.float32)
    prior_var = jnp.exp(jax.random.normal(k_pv, (S, X), dtype=jnp.float32))  # > 0
    q_mu = prior_mean                      # module inits q_mu from prior_mean
    q_var = jax.random.normal(k_qv, (S, X), dtype=jnp.float32)
    # self.sample_eps(): eps ~ N(0,1) of shape (num_subj, num_taxa)
    eps = jax.random.normal(k_eps, (S, X), dtype=jnp.float32)

    x, kl = forward(q_mu, q_var, prior_mean, prior_var, eps)
    jax.block_until_ready((x, kl))

    x_r, kl_r = reference(q_mu, q_var, prior_mean, prior_var, eps)
    assert x.shape == (S, X)
    assert jnp.allclose(x, x_r, atol=1e-5, rtol=1e-5)
    assert jnp.allclose(kl, kl_r, atol=1e-3, rtol=1e-5)

    print("KERNEL_OK")
</pallas_src>

<mosaic_0001>
module attributes {stable_mosaic.version = 11 : i64} {
  func.func @_logx_kernel(%arg0: memref<8x128xf32, #tpu.memory_space<vmem>>, %arg1: memref<8x128xf32, #tpu.memory_space<vmem>>, %arg2: memref<8x128xf32, #tpu.memory_space<vmem>>, %arg3: memref<8x128xf32, #tpu.memory_space<vmem>>, %arg4: memref<8x128xf32, #tpu.memory_space<vmem>>, %arg5: memref<8x128xf32, #tpu.memory_space<vmem>>, %arg6: memref<1x1xf32, #tpu.memory_space<smem>>) attributes {dimension_semantics = [], scalar_prefetch = 0 : i64, scratch_operands = 0 : i64, tpu.core_type = #tpu.core_type<tc>} {
    %c0 = arith.constant 0 : index
    %c0_0 = arith.constant 0 : index
    %0 = vector.load %arg0[%c0, %c0_0] : memref<8x128xf32, #tpu.memory_space<vmem>>, vector<8x128xf32>
    %c0_1 = arith.constant 0 : index
    %c0_2 = arith.constant 0 : index
    %1 = vector.load %arg1[%c0_1, %c0_2] : memref<8x128xf32, #tpu.memory_space<vmem>>, vector<8x128xf32>
    %2 = math.exp %1 : vector<8x128xf32>
    %3 = math.sqrt %2 : vector<8x128xf32>
    %c0_3 = arith.constant 0 : index
    %c0_4 = arith.constant 0 : index
    %4 = vector.load %arg4[%c0_3, %c0_4] : memref<8x128xf32, #tpu.memory_space<vmem>>, vector<8x128xf32>
    %5 = arith.mulf %3, %4 : vector<8x128xf32>
    %6 = arith.addf %0, %5 : vector<8x128xf32>
    %c0_5 = arith.constant 0 : index
    %c0_6 = arith.constant 0 : index
    %7 = vector.load %arg5[%c0_5, %c0_6] : memref<8x128xf32, #tpu.memory_space<vmem>>, vector<8x128xf32>
    tpu.vector_store %arg5[%c0_5, %c0_6], %6 {strides = array<i32>} : memref<8x128xf32, #tpu.memory_space<vmem>>, vector<8x128xf32>,
    %c0_7 = arith.constant 0 : index
    %c0_8 = arith.constant 0 : index
    %8 = vector.load %arg2[%c0_7, %c0_8] : memref<8x128xf32, #tpu.memory_space<vmem>>, vector<8x128xf32>
    %c0_9 = arith.constant 0 : index
    %c0_10 = arith.constant 0 : index
    %9 = vector.load %arg3[%c0_9, %c0_10] : memref<8x128xf32, #tpu.memory_space<vmem>>, vector<8x128xf32>
    %10 = math.log %9 : vector<8x128xf32>
    %11 = arith.subf %10, %1 : vector<8x128xf32>
    %12 = arith.subf %0, %8 : vector<8x128xf32>
    %13 = arith.mulf %12, %12 : vector<8x128xf32>
    %14 = arith.addf %2, %13 : vector<8x128xf32>
    %15 = arith.divf %14, %9 : vector<8x128xf32>
    %16 = arith.addf %11, %15 : vector<8x128xf32>
    %cst = arith.constant 1.000000e+00 : f32
    %17 = vector.broadcast %cst : f32 to vector<8x128xf32>
    %18 = arith.subf %16, %17 : vector<8x128xf32>
    %cst_11 = arith.constant 5.000000e-01 : f32
    %19 = vector.broadcast %cst_11 : f32 to vector<8x128xf32>
    %20 = arith.mulf %19, %18 : vector<8x128xf32>
    %21 = vector.shape_cast %20 : vector<8x128xf32> to vector<1x8x128xf32>
    %cst_12 = arith.constant dense<0.000000e+00> : vector<1xf32>
    %22 = vector.multi_reduction <add>, %21, %cst_12 [1, 2] : vector<1x8x128xf32> to vector<1xf32>
    %23 = vector.shape_cast %22 : vector<1xf32> to vector<1x1x1xf32>
    %24 = vector.extract %23[0, 0, 0] : f32 from vector<1x1x1xf32>
    %c0_13 = arith.constant 0 : index
    %c0_14 = arith.constant 0 : index
    %25 = memref.load %arg6[%c0_13, %c0_14] : memref<1x1xf32, #tpu.memory_space<smem>>
    memref.store %24, %arg6[%c0_13, %c0_14] : memref<1x1xf32, #tpu.memory_space<smem>>
    return
  }
}

</mosaic_0001>

<llo_original>
// kernel: tpu_custom_call.1
$region0: #{tpu_custom_call.1}
  #allocation0 [shape = 'u32[]', space=smem, size = 0x4, offset = 0x4, fixed_abs, tag = 'smem constant byte address 0x4 - core index']
  #allocation1 [shape = 'u32[144,128]{1,0:T(1,128)}', space=vmem, size = 0x12000, scoped, tag = 'internal scratch']
  %s0 = inlined_call_operand.hbm [shape: f32[8,128], index: 0, kind: input, shape index: {}]
  %s1 = inlined_call_operand.hbm [shape: f32[8,128], index: 1, kind: input, shape index: {}]
  %s2 = inlined_call_operand.hbm [shape: f32[8,128], index: 2, kind: input, shape index: {}]
  %s3 = inlined_call_operand.vmem [shape: f32[8,128], index: 3, kind: input, shape index: {}]
  %s4 = inlined_call_operand.hbm [shape: f32[8,128], index: 4, kind: input, shape index: {}]
  %s5 = inlined_call_operand.hbm [shape: f32[8,128], index: 5, kind: output, shape index: {0}]
  %s6 = inlined_call_operand.hbm [shape: f32[1,1], index: 6, kind: output, shape index: {1}]
  %7 = xla_tuple %s5, %s6
  %s8 = sld [smem:[#allocation0]]
  $region54: #{tpu_custom_call.1} parent=0
    _
  %s10 = ssub.s32 1, %s8
  %s11 = scalar_select 0, %s10, %s8
  $region1: #{tpu_custom_call.1} parent=0
    #allocation2 [shape = 'u8[4096]{0}', space=vmem, size = 0x1000, scoped, tag = 'input window, operand 0, single buffered']
    #allocation3 [shape = 's32[1]{0}', space=sflag, size = 0x4, scoped, tag = 'scoped memory for tpu_custom_call.1']
    #allocation4 [shape = 's32[1]{0}', space=sflag, size = 0x4, scoped, tag = 'scoped memory for tpu_custom_call.1']
    #allocation5 [shape = 's32[1]{0}', space=sflag, size = 0x4, scoped, tag = 'scoped memory for tpu_custom_call.1']
    #allocation6 [shape = 'u8[4096]{0}', space=vmem, size = 0x1000, scoped, tag = 'input window, operand 1, single buffered']
    #allocation7 [shape = 's32[1]{0}', space=sflag, size = 0x4, scoped, tag = 'scoped memory for tpu_custom_call.1']
    #allocation8 [shape = 'u8[4096]{0}', space=vmem, size = 0x1000, scoped, tag = 'input window, operand 2, single buffered']
    #allocation9 [shape = 'u8[4096]{0}', space=vmem, size = 0x1000, scoped, tag = 'input window, operand 4, single buffered']
    #allocation10 [shape = 's32[1]{0}', space=sflag, size = 0x4, scoped, tag = 'scoped memory for tpu_custom_call.1']
    #allocation11 [shape = 'u8[4096]{0}', space=vmem, size = 0x1000, scoped, tag = 'output window, operand 0, single buffered']
    #allocation12 [shape = 'u8[512]{0}', space=smem, size = 0x200, scoped, tag = 'output window, operand 1, single buffered']
    %12 = vsyncpa [#allocation3], 0
    %13 = vsyncpa [#allocation7], 0
    %14 = vsyncpa [#allocation10], 0
    %15 = vsyncpa [#allocation4], 0
    %16 = vsyncpa [#allocation5], 0
    // Predicated region
    $region2: #{tpu_custom_call.1} parent=1 // pred_check
      _
    $region3: #{tpu_custom_call.1} parent=1 // pred_check_branch
      %18 = sbr.rel (0) target = $region5
    $region4: #{tpu_custom_call.1} parent=1 // pred_region
      %s20 = ssub.s32 128, 128
      %21 = vsyncadd [#allocation3], %s20
      %s23 = sshll.u32 [#allocation2], 4
      %s24 = int_to_ptr.vmem [resolvable:$true] %s23
      %26 = dma.hbm_to_vmem [thread:$0]  %s0, 128, %s24, [#allocation3]
    $region5: #{tpu_custom_call.1} parent=1 // pred_fallthru
      _
    // Predicated region
    $region6: #{tpu_custom_call.1} parent=1 // pred_check
      _
    $region7: #{tpu_custom_call.1} parent=1 // pred_check_branch
      %28 = sbr.rel (0) target = $region9
    $region8: #{tpu_custom_call.1} parent=1 // pred_region
      %s30 = ssub.s32 128, 128
      %31 = vsyncadd [#allocation7], %s30
      %s33 = sshll.u32 [#allocation6], 4
      %s34 = int_to_ptr.vmem [resolvable:$true] %s33
      %36 = dma.hbm_to_vmem [thread:$0]  %s1, 128, %s34, [#allocation7]
    $region9: #{tpu_custom_call.1} parent=1 // pred_fallthru
      _
    // Predicated region
    $region10: #{tpu_custom_call.1} parent=1 // pred_check
      _
    $region11: #{tpu_custom_call.1} parent=1 // pred_check_branch
      %38 = sbr.rel (0) target = $region13
    $region12: #{tpu_custom_call.1} parent=1 // pred_region
      %s40 = ssub.s32 128, 128
      %41 = vsyncadd [#allocation7], %s40
      %s43 = sshll.u32 [#allocation8], 4
      %s44 = int_to_ptr.vmem [resolvable:$true] %s43
      %46 = dma.hbm_to_vmem [thread:$0]  %s2, 128, %s44, [#allocation7]
    $region13: #{tpu_custom_call.1} parent=1 // pred_fallthru
      _
    // Predicated region
    $region14: #{tpu_custom_call.1} parent=1 // pred_check
      _
    $region15: #{tpu_custom_call.1} parent=1 // pred_check_branch
      %48 = sbr.rel (0) target = $region17
    $region16: #{tpu_custom_call.1} parent=1 // pred_region
      _
    $region17: #{tpu_custom_call.1} parent=1 // pred_fallthru
      _
    // Predicated region
    $region18: #{tpu_custom_call.1} parent=1 // pred_check
      _
    $region19: #{tpu_custom_call.1} parent=1 // pred_check_branch
      %50 = sbr.rel (0) target = $region21
    $region20: #{tpu_custom_call.1} parent=1 // pred_region
      %s52 = ssub.s32 128, 128
      %53 = vsyncadd [#allocation10], %s52
      %s55 = sshll.u32 [#allocation9], 4
      %s56 = int_to_ptr.vmem [resolvable:$true] %s55
      %58 = dma.hbm_to_vmem [thread:$0]  %s4, 128, %s56, [#allocation10]
    $region21: #{tpu_custom_call.1} parent=1 // pred_fallthru
      _
    // Predicated region
    $region22: #{tpu_custom_call.1} parent=1 // pred_check
      _
    $region23: #{tpu_custom_call.1} parent=1 // pred_check_branch
      %60 = sbr.rel (0) target = $region25
    $region24: #{tpu_custom_call.1} parent=1 // pred_region
      %61 = dma.done [#allocation3], 128
    $region25: #{tpu_custom_call.1} parent=1 // pred_fallthru
      _
    // Predicated region
    $region26: #{tpu_custom_call.1} parent=1 // pred_check
      _
    $region27: #{tpu_custom_call.1} parent=1 // pred_check_branch
      %63 = sbr.rel (0) target = $region29
    $region28: #{tpu_custom_call.1} parent=1 // pred_region
      %64 = dma.done [#allocation7], 128
    $region29: #{tpu_custom_call.1} parent=1 // pred_fallthru
      _
    // Predicated region
    $region30: #{tpu_custom_call.1} parent=1 // pred_check
      _
    $region31: #{tpu_custom_call.1} parent=1 // pred_check_branch
      %66 = sbr.rel (0) target = $region33
    $region32: #{tpu_custom_call.1} parent=1 // pred_region
      %67 = dma.done [#allocation7], 128
    $region33: #{tpu_custom_call.1} parent=1 // pred_fallthru
      _
    // Predicated region
    $region34: #{tpu_custom_call.1} parent=1 // pred_check
      _
    $region35: #{tpu_custom_call.1} parent=1 // pred_check_branch
      %69 = sbr.rel (0) target = $region37
    $region36: #{tpu_custom_call.1} parent=1 // pred_region
      %70 = dma.done [#allocation10], 128
    $region37: #{tpu_custom_call.1} parent=1 // pred_fallthru
      _
    %v71 = vld [vmem:[#allocation2] sm:$0xff]
    %v72 = vld [vmem:[#allocation6] sm:$0xff]
    %v73 = vmul.f32 %v72, 1.442695
    %v74 = vpow.pop %v73
    %v75 = vrsqrt.pop %v74
    %v76 = vmul.f32 %v74, %v75
    %vm77 = vcmp.eq.f32.partialorder %v74, inf
    %v78 = vsel %vm77, %v74, %v76
    %vm79 = vcmp.eq.f32.partialorder %v74, 0.0
    %v80 = vand.u32 %v74, 2147483648
    %v81 = vsel %vm79, %v80, %v78
    %v82 = vld [vmem:[#allocation9] sm:$0xff]
    %v83 = vmul.f32 %v81, %v82
    %v84 = vadd.f32 %v71, %v83
    %85 = vst [vmem:[#allocation11] sm:$0xff] %v84
    %v86 = vld [vmem:[#allocation8] sm:$0xff]
    %v87 = vld [vmem:[%s3] sm:$0xff]
    %v88 = vlog2.pop %v87
    %v89 = vmul.f32 %v88, 0.6931472
    %v90 = vsub.f32 %v89, %v72
    %v91 = vsub.f32 %v71, %v86
    %v92 = vmul.f32 %v91, %v91
    %v93 = vadd.f32 %v74, %v92
    %v94 = vrcp.pop %v87
    %v95 = vmul.f32 %v93, %v94
    %v96 = vadd.f32 %v90, %v95
    %v97 = vsub.f32 %v96, 1.0
    %v98 = vmul.f32 %v97, 0.5
    %99 = vadd.xlane.f32.xlu0 %v98
    %v100 = vpop.xlane.xlu0 %99
    %v101 = vrot.slane %v100, 4
    %v102 = vadd.f32 %v100, %v101
    %v103 = vrot.slane %v102, 2
    %v104 = vadd.f32 %v102, %v103
    %v105 = vrot.slane %v104, 1
    %v106 = vadd.f32 %v104, %v105
    %s107 = vtos %v106
    %s108 = scalar_lea.smem [#allocation12], 0
    %109 = sst [smem:[%s108]] %s107
    // Predicated region
    $region38: #{tpu_custom_call.1} parent=1 // pred_check
      _
    $region39: #{tpu_custom_call.1} parent=1 // pred_check_branch
      %111 = sbr.rel (0) target = $region41
    $region40: #{tpu_custom_call.1} parent=1 // pred_region
      %s113 = ssub.s32 128, 128
      %114 = vsyncadd [#allocation4], %s113
      %s116 = sshll.u32 [#allocation11], 4
      %s117 = int_to_ptr.vmem [resolvable:$true] %s116
      %119 = dma.vmem_to_hbm [thread:$0]  %s117, 128, %s5, [#allocation4]
    $region41: #{tpu_custom_call.1} parent=1 // pred_fallthru
      _
    // Predicated region
    $region42: #{tpu_custom_call.1} parent=1 // pred_check
      _
    $region43: #{tpu_custom_call.1} parent=1 // pred_check_branch
      %121 = sbr.rel (0) target = $region45
    $region44: #{tpu_custom_call.1} parent=1 // pred_region
      %s123 = ssub.s32 16, 16
      %124 = vsyncadd [#allocation5], %s123
      %127 = dma.smem_to_hbm [#allocation12], 16, %s6, [#allocation5]
    $region45: #{tpu_custom_call.1} parent=1 // pred_fallthru
      _
    // Predicated region
    $region46: #{tpu_custom_call.1} parent=1 // pred_check
      _
    $region47: #{tpu_custom_call.1} parent=1 // pred_check_branch
      %129 = sbr.rel (0) target = $region49
    $region48: #{tpu_custom_call.1} parent=1 // pred_region
      %130 = dma.done [#allocation4], 128
    $region49: #{tpu_custom_call.1} parent=1 // pred_fallthru
      _
    // Predicated region
    $region50: #{tpu_custom_call.1} parent=1 // pred_check
      _
    $region51: #{tpu_custom_call.1} parent=1 // pred_check_branch
      %132 = sbr.rel (0) target = $region53
    $region52: #{tpu_custom_call.1} parent=1 // pred_region
      %133 = dma.done [#allocation5], 16
    $region53: #{tpu_custom_call.1} parent=1 // pred_fallthru
      _
    %134 = sfence
    %135 = vsyncpa [#allocation3], 1
    %136 = vsyncpa [#allocation7], 1
    %137 = vsyncpa [#allocation10], 1
    %138 = vsyncpa [#allocation4], 1
    %139 = vsyncpa [#allocation5], 1

</llo_original>
